<compile_context>
chip_gen: v7x
topology: tpu7x:2x2x1
jax: 0.10.0
libtpu: 0.0.40
codegen_flags: <defaults>
</compile_context>

<pallas_src>
import jax
import jax.numpy as jnp
from jax.experimental import pallas as pl
from jax.experimental.pallas import tpu as pltpu


def _dice_kernel(score_ref, alpha_ref, out_ref):
    """score_ref: VMEM (TB, E); alpha_ref: VMEM (1, E); out_ref: VMEM (TB, E)."""
    s = score_ref[...]
    a = alpha_ref[...]                       # (1, E) -> broadcasts over rows
    p = jax.nn.sigmoid(s)                    # EUP exp + VPU ops
    # alpha*(1-p)*s + p*s  ==  s * (alpha + (1 - alpha) * p)
    out_ref[...] = s * (a + (1.0 - a) * p)


def dice(score, alpha, *, block_rows=512):
    """Dice activation.

    score: float array (..., E)
    alpha: float array (E,)   (the learnable per-channel parameter)
    """
    orig_shape = score.shape
    E = orig_shape[-1]
    x = score.reshape(-1, E)
    N = x.shape[0]

    # Tile rows: either the whole (small) array in one block, or 8-aligned
    # tiles of `block_rows` rows (pad the row count so the grid divides evenly).
    tb = N if N <= block_rows else block_rows
    pad = (-N) % tb
    if pad:
        x = jnp.pad(x, ((0, pad), (0, 0)))
    n_pad = x.shape[0]

    a2 = alpha.reshape(1, E).astype(x.dtype)

    out = pl.pallas_call(
        _dice_kernel,
        out_shape=jax.ShapeDtypeStruct((n_pad, E), x.dtype),
        grid_spec=pltpu.PrefetchScalarGridSpec(
            num_scalar_prefetch=0,
            grid=(n_pad // tb,),
            in_specs=[
                pl.BlockSpec((tb, E), lambda i: (i, 0)),
                pl.BlockSpec((1, E), lambda i: (0, 0)),   # alpha, resident
            ],
            out_specs=pl.BlockSpec((tb, E), lambda i: (i, 0)),
        ),
        compiler_params=pltpu.CompilerParams(
            dimension_semantics=("parallel",),            # megacore on v7x
        ),
    )(x, a2)

    if pad:
        out = out[:N]
    return out.reshape(orig_shape)


if __name__ == "__main__":
    key = jax.random.PRNGKey(0)
    k_score, k_alpha = jax.random.split(key)

    # Small shapes consistent with the module: Dice is applied over the last
    # (embedding) dim; use a lane-dense emb_size of 128.
    batch, seq, emb_size = 2, 8, 128
    score = jax.random.normal(k_score, (batch, seq, emb_size), dtype=jnp.float32)
    # The module initializes alpha to zeros; use a nonzero alpha here so the
    # full formula (both branches) is exercised and verified.
    alpha = jax.random.normal(k_alpha, (emb_size,), dtype=jnp.float32) * 0.25

    out = dice(score, alpha)
    out = jax.block_until_ready(out)

    # Pure-JAX reference matching the PyTorch forward exactly.
    p = jax.nn.sigmoid(score)
    ref = alpha * (1.0 - p) * score + p * score

    assert out.shape == score.shape
    assert jnp.allclose(out, ref, atol=1e-6), "mismatch vs reference"

    # Also check the alpha == 0 case (the module's initial state).
    out0 = jax.block_until_ready(dice(score, jnp.zeros((emb_size,), jnp.float32)))
    ref0 = jax.nn.sigmoid(score) * score
    assert jnp.allclose(out0, ref0, atol=1e-6), "mismatch vs reference (alpha=0)"

    print("KERNEL_OK")
</pallas_src>

<mosaic_0001>
module attributes {stable_mosaic.version = 11 : i64} {
  func.func @_dice_kernel(%arg0: i32, %arg1: memref<16x128xf32, #tpu.memory_space<vmem>>, %arg2: memref<1x128xf32, #tpu.memory_space<vmem>>, %arg3: memref<16x128xf32, #tpu.memory_space<vmem>>) attributes {dimension_semantics = [#tpu.dimension_semantics<parallel>], iteration_bounds = array<i64: 1>, scalar_prefetch = 0 : i64, scratch_operands = 0 : i64, tpu.core_type = #tpu.core_type<tc>, window_params = [{transform_indices = @transform_0, window_bounds = array<i64: 16, 128>}, {pipeline_mode = #tpu.pipeline_mode<synchronous>, transform_indices = @transform_1, window_bounds = array<i64: 1, 128>}, {transform_indices = @transform_2, window_bounds = array<i64: 16, 128>}]} {
    %c0 = arith.constant 0 : index
    %c0_0 = arith.constant 0 : index
    %0 = vector.load %arg1[%c0, %c0_0] : memref<16x128xf32, #tpu.memory_space<vmem>>, vector<16x128xf32>
    %c0_1 = arith.constant 0 : index
    %c0_2 = arith.constant 0 : index
    %1 = vector.load %arg2[%c0_1, %c0_2] : memref<1x128xf32, #tpu.memory_space<vmem>>, vector<1x128xf32>
    %2 = arith.negf %0 : vector<16x128xf32>
    %3 = math.exp %2 : vector<16x128xf32>
    %cst = arith.constant 1.000000e+00 : f32
    %4 = vector.broadcast %cst : f32 to vector<16x128xf32>
    %5 = arith.addf %4, %3 : vector<16x128xf32>
    %6 = arith.divf %4, %5 : vector<16x128xf32>
    %cst_3 = arith.constant 1.000000e+00 : f32
    %7 = vector.broadcast %cst_3 : f32 to vector<1x128xf32>
    %8 = arith.subf %7, %1 : vector<1x128xf32>
    %9 = vector.broadcast %8 : vector<1x128xf32> to vector<16x128xf32>
    %10 = arith.mulf %9, %6 : vector<16x128xf32>
    %11 = vector.broadcast %1 : vector<1x128xf32> to vector<16x128xf32>
    %12 = arith.addf %11, %10 : vector<16x128xf32>
    %13 = arith.mulf %0, %12 : vector<16x128xf32>
    %c0_4 = arith.constant 0 : index
    %c0_5 = arith.constant 0 : index
    %14 = vector.load %arg3[%c0_4, %c0_5] : memref<16x128xf32, #tpu.memory_space<vmem>>, vector<16x128xf32>
    tpu.vector_store %arg3[%c0_4, %c0_5], %13 {strides = array<i32>} : memref<16x128xf32, #tpu.memory_space<vmem>>, vector<16x128xf32>,
    return
  }
  func.func @transform_0(%arg0: i32) -> (i32, i32) {
    %c0_i32 = arith.constant 0 : i32
    %c0_i32_0 = arith.constant 0 : i32
    return %arg0, %c0_i32 : i32, i32
  }
  func.func @transform_1(%arg0: i32) -> (i32, i32) {
    %c0_i32 = arith.constant 0 : i32
    %c0_i32_0 = arith.constant 0 : i32
    %c0_i32_1 = arith.constant 0 : i32
    return %c0_i32, %c0_i32_0 : i32, i32
  }
  func.func @transform_2(%arg0: i32) -> (i32, i32) {
    %c0_i32 = arith.constant 0 : i32
    %c0_i32_0 = arith.constant 0 : i32
    return %arg0, %c0_i32 : i32, i32
  }
}

</mosaic_0001>

<llo_original>
// kernel: tpu_custom_call.1
$region0: #{tpu_custom_call.1}
  #allocation0 [shape = 'u32[]', space=smem, size = 0x4, offset = 0x4, fixed_abs, tag = 'smem constant byte address 0x4 - core index']
  #allocation1 [shape = 'u32[144,128]{1,0:T(1,128)}', space=vmem, size = 0x12000, scoped, tag = 'internal scratch']
  %s0 = inlined_call_operand.hbm [shape: f32[16,128], index: 0, kind: input, shape index: {}]
  %s1 = inlined_call_operand.vmem [shape: f32[1,128], index: 1, kind: input, shape index: {}]
  %s2 = inlined_call_operand.hbm [shape: f32[16,128], index: 2, kind: output, shape index: {}]
  %s3 = sld [smem:[#allocation0]]
  $region22: #{tpu_custom_call.1} parent=0
    _
  %s5 = ssub.s32 1, %s3
  %s6 = scalar_select 0, %s5, %s3
  $region1: #{tpu_custom_call.1} parent=0
    #allocation2 [shape = 'u8[8192]{0}', space=vmem, size = 0x2000, scoped, tag = 'input window, operand 0, single buffered']
    #allocation3 [shape = 's32[1]{0}', space=sflag, size = 0x4, scoped, tag = 'scoped memory for tpu_custom_call.1']
    #allocation4 [shape = 's32[1]{0}', space=sflag, size = 0x4, scoped, tag = 'scoped memory for tpu_custom_call.1']
    #allocation5 [shape = 'u8[8192]{0}', space=vmem, size = 0x2000, scoped, tag = 'output window, operand 0, single buffered']
    %7 = vsyncpa [#allocation3], 0
    %8 = vsyncpa [#allocation4], 0
    // Predicated region
    $region2: #{tpu_custom_call.1} parent=1 // pred_check
      _
    $region3: #{tpu_custom_call.1} parent=1 // pred_check_branch
      %10 = sbr.rel (0) target = $region5
    $region4: #{tpu_custom_call.1} parent=1 // pred_region
      %s12 = ssub.s32 256, 256
      %13 = vsyncadd [#allocation3], %s12
      %s14 = sshll.u32 [#allocation2], 4
      %s15 = int_to_ptr.vmem [resolvable:$true] %s14
      %20 = dma.hbm_to_vmem [thread:$0]  %s0, 256, %s15, [#allocation3], 128, 128, 8
    $region5: #{tpu_custom_call.1} parent=1 // pred_fallthru
      _
    // Predicated region
    $region6: #{tpu_custom_call.1} parent=1 // pred_check
      _
    $region7: #{tpu_custom_call.1} parent=1 // pred_check_branch
      %22 = sbr.rel (0) target = $region9
    $region8: #{tpu_custom_call.1} parent=1 // pred_region
      _
    $region9: #{tpu_custom_call.1} parent=1 // pred_fallthru
      _
    // Predicated region
    $region10: #{tpu_custom_call.1} parent=1 // pred_check
      _
    $region11: #{tpu_custom_call.1} parent=1 // pred_check_branch
      %24 = sbr.rel (0) target = $region13
    $region12: #{tpu_custom_call.1} parent=1 // pred_region
      %25 = dma.done [#allocation3], 256
    $region13: #{tpu_custom_call.1} parent=1 // pred_fallthru
      _
    %v26 = vld [vmem:[#allocation2] sm:$0xff]
    %v27 = vld [vmem:[#allocation2 + $0x8] sm:$0xff]
    %v28 = vld [vmem:[%s1] sm:$0x1]
    %v29 = vxor.u32 %v26, 2147483648
    %v30 = vxor.u32 %v27, 2147483648
    %v31 = vmul.f32 %v29, 1.442695
    %v32 = vpow.pop %v31
    %v33 = vmul.f32 %v30, 1.442695
    %v34 = vpow.pop %v33
    %v35 = vadd.f32 %v32, 1.0
    %v36 = vadd.f32 %v34, 1.0
    %v37 = vrcp.pop %v35
    %v38 = vmul.f32 1.0, %v37
    %v39 = vrcp.pop %v36
    %v40 = vmul.f32 1.0, %v39
    %v41 = vsub.f32 1.0, %v28
    %v43 = vlaneseq
    %v44 = vshrl.u32 %v43, 7
    %v45 = vsub.s32 0, %v44
    %v46 = vrot.slane %v41, %v45
    %v48 = vmul.f32 %v46, %v38
    %v49 = vmul.f32 %v46, %v40
    %v51 = vlaneseq
    %v52 = vshrl.u32 %v51, 7
    %v53 = vsub.s32 0, %v52
    %v54 = vrot.slane %v28, %v53
    %v56 = vadd.f32 %v54, %v48
    %v57 = vadd.f32 %v54, %v49
    %v58 = vmul.f32 %v26, %v56
    %v59 = vmul.f32 %v27, %v57
    %60 = vst [vmem:[#allocation5] sm:$0xff] %v58
    %61 = vst [vmem:[#allocation5 + $0x8] sm:$0xff] %v59
    // Predicated region
    $region14: #{tpu_custom_call.1} parent=1 // pred_check
      _
    $region15: #{tpu_custom_call.1} parent=1 // pred_check_branch
      %63 = sbr.rel (0) target = $region17
    $region16: #{tpu_custom_call.1} parent=1 // pred_region
      %s65 = ssub.s32 256, 256
      %66 = vsyncadd [#allocation4], %s65
      %s67 = sshll.u32 [#allocation5], 4
      %s68 = int_to_ptr.vmem [resolvable:$true] %s67
      %73 = dma.vmem_to_hbm [thread:$0]  %s68, 256, %s2, [#allocation4], 128, 128, 8
    $region17: #{tpu_custom_call.1} parent=1 // pred_fallthru
      _
    // Predicated region
    $region18: #{tpu_custom_call.1} parent=1 // pred_check
      _
    $region19: #{tpu_custom_call.1} parent=1 // pred_check_branch
      %75 = sbr.rel (0) target = $region21
    $region20: #{tpu_custom_call.1} parent=1 // pred_region
      %76 = dma.done [#allocation4], 256
    $region21: #{tpu_custom_call.1} parent=1 // pred_fallthru
      _
    %77 = vsyncpa [#allocation3], 1
    %78 = vsyncpa [#allocation4], 1

</llo_original>
